<compile_context>
chip_gen: v5e
topology: v5e:2x2
jax: 0.10.0
libtpu: 0.0.40
codegen_flags: <defaults>
</compile_context>

<pallas_src>
import functools
import math

import jax
import jax.numpy as jnp
from jax.experimental import pallas as pl
from jax.experimental.pallas import tpu as pltpu

_LANES = 128
# ~2 MiB x-blocks: double-buffered x + y + R blocks stay around <= 12 MiB,
# comfortable on all generations (v7x physical VMEM is only 64 MiB).
_TARGET_BLOCK_BYTES = 2 << 20
_VMEM_LIMIT_BYTES = 32 << 20


def _cdiv(a, b):
    return -(-a // b)


def _choose_tiles(rows, channels, modes):
    """Pick (row_tile, lane_tile) for the planar (rows, C, M) spectrum.

    rows = 2*B (real planes then imag planes); channels sits on the sublane
    axis, the flattened n_modes product M on the lane axis.
    """
    row_bytes = channels * modes * 4
    if row_bytes > _TARGET_BLOCK_BYTES:
        # One planar row per block; tile the mode axis in 128-lane multiples
        # (no divisor search -> never degenerates to 128-lane tiles).
        lane_tile = max(
            _LANES, (_TARGET_BLOCK_BYTES // (channels * 4)) // _LANES * _LANES)
        return 1, lane_tile
    # Whole mode axis per block; choose how many planar rows per block.
    row_tile = max(1, min(_TARGET_BLOCK_BYTES // row_bytes, rows))
    if rows >= 2:
        # Expose at least two row steps so the "parallel" grid axis can be
        # split across TensorCores (v7x megacore).
        row_tile = min(row_tile, (rows + 1) // 2)
    # Prefer an even number of row steps (balanced across the two TCs).
    lo = max(1, row_tile // 2)
    for cand in range(row_tile, lo - 1, -1):
        if _cdiv(rows, cand) % 2 == 0:
            return cand, modes
    return row_tile, modes


def _contract_kernel(x_ref, r_ref, y_ref):
    # x_ref / y_ref: (TB, C, TL) planar real/imag tiles of the truncated
    # spectrum.  r_ref: (1, C, TL) real weights, broadcast over the TB rows.
    y_ref[...] = x_ref[...] * r_ref[...]


def spectral_contract(x3, r3):
    """Pallas contraction: planar (2B, C, M) spectrum * (1, C, M) weights."""
    rows, channels, modes = x3.shape
    row_tile, lane_tile = _choose_tiles(rows, channels, modes)
    grid = (pl.cdiv(rows, row_tile), pl.cdiv(modes, lane_tile))
    x_spec = pl.BlockSpec((row_tile, channels, lane_tile),
                          lambda i, j: (i, 0, j))
    r_spec = pl.BlockSpec((1, channels, lane_tile), lambda i, j: (0, 0, j))
    return pl.pallas_call(
        _contract_kernel,
        grid=grid,
        in_specs=[x_spec, r_spec],
        out_specs=x_spec,
        out_shape=jax.ShapeDtypeStruct((rows, channels, modes), jnp.float32),
        compiler_params=pltpu.CompilerParams(
            dimension_semantics=("parallel", "parallel"),
            vmem_limit_bytes=_VMEM_LIMIT_BYTES),
    )(x3, r3)


def spectral_conv_forward(x, R, n_modes, output_shape=None):
    """Mirrors SpectralConv.forward.

    n_modes is the *stored* module value, i.e. the last entry has already been
    replaced by (raw_last // 2 + 1), as in the PyTorch n_modes setter.
    """
    order = len(n_modes)
    mode_sizes = tuple(x.shape[2:])
    fft_dims = tuple(range(-order, 0))

    # x = torch.fft.rfftn(x, norm='forward', dim=fft_dims)
    # TODO(synk): FFT has no Pallas TPU primitive; rfftn/fftshift/irfftn stay
    # as XLA jnp.fft ops.
    X = jnp.fft.rfftn(x, norm="forward", axes=fft_dims)
    if order > 1:
        X = jnp.fft.fftshift(X, axes=fft_dims[:-1])

    # rel_modes = x[:, :, :n_modes[0], ..., :n_modes[-1]]
    slices = (slice(None), slice(None)) + tuple(slice(0, m) for m in n_modes)
    rel = X[slices]

    B, C = rel.shape[0], rel.shape[1]
    mshape = tuple(rel.shape[2:])
    M = math.prod(mshape)

    # Pack once: planar float32 (2*B, C, M) with real planes then imag planes;
    # channels on sublanes, flattened modes on lanes.  (lax.bitcast_convert_type
    # rejects complex inputs, so a single fused real/imag pack pass is the
    # cheapest legal complex->float conversion.)
    x_ri = jnp.stack([jnp.real(rel), jnp.imag(rel)], axis=0)
    x3 = x_ri.reshape(2 * B, C, M).astype(jnp.float32)
    r3 = R.astype(jnp.float32).reshape(1, C, M)

    y3 = spectral_contract(x3, r3)

    # Unpack once: planar float32 -> complex64.
    y_ri = y3.reshape((2, B, C) + mshape)
    out_fft = jax.lax.complex(y_ri[0], y_ri[1])

    if output_shape is not None:
        mode_sizes = tuple(output_shape)
    if order > 1:
        # Matches the PyTorch module, which applies fftshift (not ifftshift)
        # on the inverse path as well.
        out_fft = jnp.fft.fftshift(out_fft, axes=fft_dims[:-1])

    # x = torch.fft.irfftn(out_fft, s=mode_sizes, dim=fft_dims, norm='forward')
    return jnp.fft.irfftn(out_fft, s=mode_sizes, axes=fft_dims, norm="forward")


if __name__ == "__main__":
    # Small shapes consistent with the module: batch=2, channels=4, 16x16 grid.
    B, C, H, W = 2, 4, 16, 16
    n_modes_raw = (8, 8)

    # Replicate the PyTorch n_modes setter: last dim -> last // 2 + 1.
    n_modes = list(n_modes_raw)
    n_modes[-1] = n_modes[-1] // 2 + 1
    n_modes = tuple(n_modes)  # (8, 5)

    key = jax.random.PRNGKey(0)
    kx, kr = jax.random.split(key)
    x = jax.random.normal(kx, (B, C, H, W), dtype=jnp.float32)

    # R ~ Normal(0, (1/channels)**0.5), shape (channels, *n_modes).
    init_std = (1.0 / C) ** 0.5
    R = init_std * jax.random.normal(kr, (C,) + n_modes, dtype=jnp.float32)

    fwd = jax.jit(functools.partial(spectral_conv_forward, n_modes=n_modes))
    y = jax.block_until_ready(fwd(x, R))

    # Sanity check against a pure-JAX reference of the same forward pass.
    X = jnp.fft.rfftn(x, norm="forward", axes=(-2, -1))
    X = jnp.fft.fftshift(X, axes=(-2,))
    rel = X[:, :, : n_modes[0], : n_modes[1]]
    ref_fft = rel * R[None]
    ref_fft = jnp.fft.fftshift(ref_fft, axes=(-2,))
    y_ref = jnp.fft.irfftn(ref_fft, s=(H, W), axes=(-2, -1), norm="forward")

    assert y.shape == (B, C, H, W), y.shape
    assert y.dtype == jnp.float32, y.dtype
    assert jnp.allclose(y, y_ref, atol=1e-5, rtol=1e-5)
    print("KERNEL_OK")
</pallas_src>

<mosaic_0001>
module attributes {stable_mosaic.version = 11 : i64} {
  func.func @_contract_kernel(%arg0: i32, %arg1: i32, %arg2: memref<2x4x40xf32, #tpu.memory_space<vmem>>, %arg3: memref<1x4x40xf32, #tpu.memory_space<vmem>>, %arg4: memref<2x4x40xf32, #tpu.memory_space<vmem>>) attributes {dimension_semantics = [#tpu.dimension_semantics<parallel>, #tpu.dimension_semantics<parallel>], iteration_bounds = array<i64: 2, 1>, scalar_prefetch = 0 : i64, scratch_operands = 0 : i64, tpu.core_type = #tpu.core_type<tc>, window_params = [{transform_indices = @transform_0, window_bounds = array<i64: 2, 4, 40>}, {transform_indices = @transform_1, window_bounds = array<i64: 1, 4, 40>}, {transform_indices = @transform_2, window_bounds = array<i64: 2, 4, 40>}]} {
    %c0 = arith.constant 0 : index
    %c0_0 = arith.constant 0 : index
    %c0_1 = arith.constant 0 : index
    %0 = vector.load %arg2[%c0, %c0_0, %c0_1] : memref<2x4x40xf32, #tpu.memory_space<vmem>>, vector<2x4x40xf32>
    %c0_2 = arith.constant 0 : index
    %c0_3 = arith.constant 0 : index
    %c0_4 = arith.constant 0 : index
    %1 = vector.load %arg3[%c0_2, %c0_3, %c0_4] : memref<1x4x40xf32, #tpu.memory_space<vmem>>, vector<1x4x40xf32>
    %2 = vector.broadcast %1 : vector<1x4x40xf32> to vector<2x4x40xf32>
    %3 = arith.mulf %0, %2 : vector<2x4x40xf32>
    %c0_5 = arith.constant 0 : index
    %c0_6 = arith.constant 0 : index
    %c0_7 = arith.constant 0 : index
    %4 = vector.load %arg4[%c0_5, %c0_6, %c0_7] : memref<2x4x40xf32, #tpu.memory_space<vmem>>, vector<2x4x40xf32>
    tpu.vector_store %arg4[%c0_5, %c0_6, %c0_7], %3 {strides = array<i32>} : memref<2x4x40xf32, #tpu.memory_space<vmem>>, vector<2x4x40xf32>,
    return
  }
  func.func @transform_0(%arg0: i32, %arg1: i32) -> (i32, i32, i32) {
    %c0_i32 = arith.constant 0 : i32
    %c0_i32_0 = arith.constant 0 : i32
    return %arg0, %c0_i32, %arg1 : i32, i32, i32
  }
  func.func @transform_1(%arg0: i32, %arg1: i32) -> (i32, i32, i32) {
    %c0_i32 = arith.constant 0 : i32
    %c0_i32_0 = arith.constant 0 : i32
    %c0_i32_1 = arith.constant 0 : i32
    return %c0_i32, %c0_i32_0, %arg1 : i32, i32, i32
  }
  func.func @transform_2(%arg0: i32, %arg1: i32) -> (i32, i32, i32) {
    %c0_i32 = arith.constant 0 : i32
    %c0_i32_0 = arith.constant 0 : i32
    return %arg0, %c0_i32, %arg1 : i32, i32, i32
  }
}

</mosaic_0001>

<llo_original>
// kernel: squeeze.2
$region0: #{squeeze.2}
  %s0 = inlined_call_operand.vmem [shape: f32[2,4,40], index: 0, kind: input, shape index: {}]
  %s1 = inlined_call_operand.vmem [shape: f32[2,4,8,5], index: 1, kind: output, shape index: {}]
  $region1: #{squeeze.2} parent=0
    #allocation0 [shape = 'u8[8192]{0}', space=vmem, size = 0x2000, scoped, tag = 'scoped mem for input reshape']
    %s3 = ssub.s32 16, 1
    %s4 = scalar_lea.vmem %s0, 4
    %v5 = vld [vmem:[%s4] sm:%s3]
    %s6 = scalar_lea.vmem [#allocation0], 8
    %7 = vst [vmem:[%s6] sm:%s3] %v5
    %v8 = vld [vmem:[%s0] sm:%s3]
    %9 = vst [vmem:[#allocation0] sm:%s3] %v8
    %v10 = vld [vmem:[#allocation0] sm:$0xf]
    %vm11 = vcmask 39936
    %12 = vst.msk [vmem:[%s1] ss:$8 sm:$0xf] %vm11, %v10
    %s13 = scalar_lea.vmem [#allocation0], 8
    %v14 = vld [vmem:[%s13] sm:$0xf]
    %vm15 = vcmask 39936
    %s16 = scalar_lea.vmem %s1, 32
    %17 = vst.msk [vmem:[%s16] ss:$8 sm:$0xf] %vm15, %v14
    %v18 = vld.sshfl [vmem:[#allocation0] sm:$0xff pattern:$0xba983210]
    %19 = vrot.lane.b32.xlu0 %v18, 123
    %v20 = vpop.permute.xlu0 %19
    %vm21 = vcmask 39936
    %s22 = scalar_lea.vmem %s1, 1
    %23 = vst.msk [vmem:[%s22] ss:$8 sm:$0xf] %vm21, %v20
    %s24 = scalar_lea.vmem %s1, 1
    %25 = vst.msk [vmem:[%s24] ss:$8 sm:$0xf0] %vm21, %v20
    %v26 = vld.sshfl [vmem:[#allocation0] sm:$0xff pattern:$0xba983210]
    %27 = vrot.lane.b32.xlu0 %v26, 118
    %v28 = vpop.permute.xlu0 %27
    %vm29 = vcmask 39936
    %s30 = scalar_lea.vmem %s1, 2
    %31 = vst.msk [vmem:[%s30] ss:$8 sm:$0xf] %vm29, %v28
    %s32 = scalar_lea.vmem %s1, 2
    %33 = vst.msk [vmem:[%s32] ss:$8 sm:$0xf0] %vm29, %v28
    %v34 = vld.sshfl [vmem:[#allocation0] sm:$0xff pattern:$0xba983210]
    %35 = vrot.lane.b32.xlu0 %v34, 113
    %v36 = vpop.permute.xlu0 %35
    %vm37 = vcmask 39936
    %s38 = scalar_lea.vmem %s1, 3
    %39 = vst.msk [vmem:[%s38] ss:$8 sm:$0xf] %vm37, %v36
    %s40 = scalar_lea.vmem %s1, 3
    %41 = vst.msk [vmem:[%s40] ss:$8 sm:$0xf0] %vm37, %v36
    %v42 = vld.sshfl [vmem:[#allocation0] sm:$0xff pattern:$0xba983210]
    %43 = vrot.lane.b32.xlu0 %v42, 108
    %v44 = vpop.permute.xlu0 %43
    %vm45 = vcmask 39936
    %s46 = scalar_lea.vmem %s1, 4
    %47 = vst.msk [vmem:[%s46] ss:$8 sm:$0xf] %vm45, %v44
    %s48 = scalar_lea.vmem %s1, 4
    %49 = vst.msk [vmem:[%s48] ss:$8 sm:$0xf0] %vm45, %v44
    %v50 = vld.sshfl [vmem:[#allocation0] sm:$0xff pattern:$0xba983210]
    %51 = vrot.lane.b32.xlu0 %v50, 103
    %v52 = vpop.permute.xlu0 %51
    %vm53 = vcmask 39936
    %s54 = scalar_lea.vmem %s1, 5
    %55 = vst.msk [vmem:[%s54] ss:$8 sm:$0xf] %vm53, %v52
    %s56 = scalar_lea.vmem %s1, 5
    %57 = vst.msk [vmem:[%s56] ss:$8 sm:$0xf0] %vm53, %v52
    %v58 = vld.sshfl [vmem:[#allocation0] sm:$0xff pattern:$0xba983210]
    %59 = vrot.lane.b32.xlu0 %v58, 98
    %v60 = vpop.permute.xlu0 %59
    %vm61 = vcmask 39936
    %s62 = scalar_lea.vmem %s1, 6
    %63 = vst.msk [vmem:[%s62] ss:$8 sm:$0xf] %vm61, %v60
    %s64 = scalar_lea.vmem %s1, 6
    %65 = vst.msk [vmem:[%s64] ss:$8 sm:$0xf0] %vm61, %v60
    %v66 = vld.sshfl [vmem:[#allocation0] sm:$0xff pattern:$0xba983210]
    %67 = vrot.lane.b32.xlu0 %v66, 93
    %v68 = vpop.permute.xlu0 %67
    %vm69 = vcmask 39936
    %s70 = scalar_lea.vmem %s1, 7
    %71 = vst.msk [vmem:[%s70] ss:$8 sm:$0xf] %vm69, %v68
    %s72 = scalar_lea.vmem %s1, 7
    %73 = vst.msk [vmem:[%s72] ss:$8 sm:$0xf0] %vm69, %v68

// kernel: reverse.0
$region0: #{reverse.0}
  %s0 = inlined_call_operand.vmem [shape: f32[2,4,16,7], index: 0, kind: input, shape index: {}]
  %s1 = inlined_call_operand.vmem [shape: f32[2,4,16,7], index: 1, kind: output, shape index: {}]
  $region1: #{reverse.0} parent=0
    #allocation0 [shape = 'u8[65536]{0}', space=vmem, size = 0x10000, scoped, tag = 'operand span for operand 0']
    #allocation1 [shape = 'u8[32768]{0}', space=vmem, size = 0x8000, scoped, tag = 'operand span for operand 1']
    %s2 = scalar_lea.vmem [#allocation0], 8
    // Predicated region
    $region2: #{reverse.0} parent=1 // pred_check
      _
    $region3: #{reverse.0} parent=1 // pred_check_branch
      %4 = sbr.rel (0) target = $region5
    $region4: #{reverse.0} parent=1 // pred_region
      // Predicated region
      $region6: #{reverse.0} parent=4 // pred_check
        _
      $region7: #{reverse.0} parent=4 // pred_check_branch
        %6 = sbr.rel (0) target = $region9
      $region8: #{reverse.0} parent=4 // pred_region
        // Predicated region
        $region21: #{reverse.0} parent=8 // pred_check
          _
        $region22: #{reverse.0} parent=8 // pred_check_branch
          %36 = sbr.rel (0) target = $region24
        $region23: #{reverse.0} parent=8 // pred_region
          loop: start=0, step=1, limit=1
          $region25: #{reverse.0} parent=23 // loop_pre_header
            _
          $region26: #{reverse.0} parent=23 // loop_header
            %s38 = sphi 0, %s42
            %p39 = scmp.ge.s32.totalorder %s38, 1
            %s43 = sphi %s0, %s0
            %s44 = sphi %s2, %s2
          $region27: #{reverse.0} parent=23 // loop_header_branch
            %41 = sbr.rel (%p39) target = $region31
          $region28: #{reverse.0} parent=23 // loop_body
            %v45 = vld [vmem:[%s43] sm:$0xff]
            %46 = vst [vmem:[%s44] sm:$0xff] %v45
            %v47 = vld [vmem:[%s43 + $0x8] sm:$0xff]
            %48 = vst [vmem:[%s44 + $0x10] sm:$0xff] %v47
            %v49 = vld [vmem:[%s43 + $0x10] sm:$0xff]
            %50 = vst [vmem:[%s44 + $0x20] sm:$0xff] %v49
            %v51 = vld [vmem:[%s43 + $0x18] sm:$0xff]
            %52 = vst [vmem:[%s44 + $0x30] sm:$0xff] %v51
            %v53 = vld [vmem:[%s43 + $0x20] sm:$0xff]
            %54 = vst [vmem:[%s44 + $0x40] sm:$0xff] %v53
            %v55 = vld [vmem:[%s43 + $0x28] sm:$0xff]
            %56 = vst [vmem:[%s44 + $0x50] sm:$0xff] %v55
            %v57 = vld [vmem:[%s43 + $0x30] sm:$0xff]
            %58 = vst [vmem:[%s44 + $0x60] sm:$0xff] %v57
            %v59 = vld [vmem:[%s43 + $0x38] sm:$0xff]
            %60 = vst [vmem:[%s44 + $0x70] sm:$0xff] %v59
          $region29: #{reverse.0} parent=23 // loop_footer
            %s42 = sadd.s32 1, %s38
          $region30: #{reverse.0} parent=23 // loop_footer_branch
            %37 = sbr.rel target = $region26
          $region31: #{reverse.0} parent=23 // loop_exit
            _
        $region24: #{reverse.0} parent=8 // pred_fallthru
          _
        // Predicated region
        $region32: #{reverse.0} parent=8 // pred_check
          _
        $region33: #{reverse.0} parent=8 // pred_check_branch
          %62 = sbr.rel target = $region35
        $region34: #{reverse.0} parent=8 // pred_region
          _
        $region35: #{reverse.0} parent=8 // pred_fallthru
          _
      $region9: #{reverse.0} parent=4 // pred_fallthru
        _
      // Predicated region
      $region10: #{reverse.0} parent=4 // pred_check
        _
      $region11: #{reverse.0} parent=4 // pred_check_branch
        %8 = sbr.rel target = $region13
      $region12: #{reverse.0} parent=4 // pred_region
        %s10 = ssub.s32 256, 1
        loop: start=0, step=1, limit=1
        $region14: #{reverse.0} parent=12 // loop_pre_header
          _
        $region15: #{reverse.0} parent=12 // loop_header
          %s12 = sphi 0, %s16
          %p13 = scmp.ge.s32.totalorder %s12, 1
          %s17 = sphi %s0, %s0
          %s18 = sphi %s2, %s2
        $region16: #{reverse.0} parent=12 // loop_header_branch
          %15 = sbr.rel (%p13) target = $region20
        $region17: #{reverse.0} parent=12 // loop_body
          %v19 = vld [vmem:[%s17] sm:%s10]
          %20 = vst [vmem:[%s18] sm:%s10] %v19
          %v21 = vld [vmem:[%s17 + $0x8] sm:%s10]
          %22 = vst [vmem:[%s18 + $0x10] sm:%s10] %v21
          %v23 = vld [vmem:[%s17 + $0x10] sm:%s10]
          %24 = vst [vmem:[%s18 + $0x20] sm:%s10] %v23
          %v25 = vld [vmem:[%s17 + $0x18] sm:%s10]
          %26 = vst [vmem:[%s18 + $0x30] sm:%s10] %v25
          %v27 = vld [vmem:[%s17 + $0x20] sm:%s10]
          %28 = vst [vmem:[%s18 + $0x40] sm:%s10] %v27
          %v29 = vld [vmem:[%s17 + $0x28] sm:%s10]
          %30 = vst [vmem:[%s18 + $0x50] sm:%s10] %v29
          %v31 = vld [vmem:[%s17 + $0x30] sm:%s10]
          %32 = vst [vmem:[%s18 + $0x60] sm:%s10] %v31
          %v33 = vld [vmem:[%s17 + $0x38] sm:%s10]
          %34 = vst [vmem:[%s18 + $0x70] sm:%s10] %v33
        $region18: #{reverse.0} parent=12 // loop_footer
          %s16 = sadd.s32 1, %s12
        $region19: #{reverse.0} parent=12 // loop_footer_branch
          %11 = sbr.rel target = $region15
        $region20: #{reverse.0} parent=12 // loop_exit
          _
      $region13: #{reverse.0} parent=4 // pred_fallthru
        _
    $region5: #{reverse.0} parent=1 // pred_fallthru
      _
    %63 = vnop
    %s64 = scalar_lea.vmem [#allocation0], 7
    %v65 = vld [vmem:[%s64] ss:$-1 sm:$0xff]
    %v66 = vrot.slane %v65, 1
    %67 = vst [vmem:[#allocation1] sm:$0xff] %v66
    %s68 = scalar_lea.vmem [#allocation0], 8
    %s69 = scalar_lea.vmem %s68, 7 [#allocation0]
    %v70 = vld [vmem:[%s69] ss:$-1 sm:$0xff]
    %v71 = vrot.slane %v70, 1
    %v72 = vlaneseq
    %v73 = vshrl.u32 %v72, 7
    %vm74 = vcmp.lt.s32.totalorder %v73, 7
    %75 = vst.msk [vmem:[#allocation1] sm:$0xff] %vm74, %v71
    %s76 = scalar_lea.vmem [#allocation1], 8
    %s77 = scalar_lea.vmem [#allocation0], 16
    %s78 = scalar_lea.vmem %s77, 7 [#allocation0]
    %v79 = vld [vmem:[%s78] ss:$-1 sm:$0xff]
    %v80 = vrot.slane %v79, 1
    %81 = vst [vmem:[%s76] sm:$0xff] %v80
    %s82 = scalar_lea.vmem %s77, 8 [#allocation0]
    %s83 = scalar_lea.vmem %s82, 7 [#allocation0]
    %v84 = vld [vmem:[%s83] ss:$-1 sm:$0xff]
    %v85 = vrot.slane %v84, 1
    %v86 = vlaneseq
    %v87 = vshrl.u32 %v86, 7
    %vm88 = vcmp.lt.s32.totalorder %v87, 7
    %89 = vst.msk [vmem:[%s76] sm:$0xff] %vm88, %v85
    %s90 = scalar_lea.vmem [#allocation1], 16
    %s91 = scalar_lea.vmem [#allocation0], 32
    %s92 = scalar_lea.vmem %s91, 7 [#allocation0]
    %v93 = vld [vmem:[%s92] ss:$-1 sm:$0xff]
    %v94 = vrot.slane %v93, 1
    %95 = vst [vmem:[%s90] sm:$0xff] %v94
    %s96 = scalar_lea.vmem %s91, 8 [#allocation0]
    %s97 = scalar_lea.vmem %s96, 7 [#allocation0]
    %v98 = vld [vmem:[%s97] ss:$-1 sm:$0xff]
    %v99 = vrot.slane %v98, 1
    %v100 = vlaneseq
    %v101 = vshrl.u32 %v100, 7
    %vm102 = vcmp.lt.s32.totalorder %v101, 7
    %103 = vst.msk [vmem:[%s90] sm:$0xff] %vm102, %v99
    %s104 = scalar_lea.vmem [#allocation1], 24
    %s105 = scalar_lea.vmem [#allocation0], 48
    %s106 = scalar_lea.vmem %s105, 7 [#allocation0]
    %v107 = vld [vmem:[%s106] ss:$-1 sm:$0xff]
    %v108 = vrot.slane %v107, 1
    %109 = vst [vmem:[%s104] sm:$0xff] %v108
    %s110 = scalar_lea.vmem %s105, 8 [#allocation0]
    %s111 = scalar_lea.vmem %s110, 7 [#allocation0]
    %v112 = vld [vmem:[%s111] ss:$-1 sm:$0xff]
    %v113 = vrot.slane %v112, 1
    %v114 = vlaneseq
    %v115 = vshrl.u32 %v114, 7
    %vm116 = vcmp.lt.s32.totalorder %v115, 7
    %117 = vst.msk [vmem:[%s104] sm:$0xff] %vm116, %v113
    %s118 = scalar_lea.vmem [#allocation1], 32
    %s119 = scalar_lea.vmem [#allocation0], 64
    %s120 = scalar_lea.vmem %s119, 7 [#allocation0]
    %v121 = vld [vmem:[%s120] ss:$-1 sm:$0xff]
    %v122 = vrot.slane %v121, 1
    %123 = vst [vmem:[%s118] sm:$0xff] %v122
    %s124 = scalar_lea.vmem %s119, 8 [#allocation0]
    %s125 = scalar_lea.vmem %s124, 7 [#allocation0]
    %v126 = vld [vmem:[%s125] ss:$-1 sm:$0xff]
    %v127 = vrot.slane %v126, 1
    %v128 = vlaneseq
    %v129 = vshrl.u32 %v128, 7
    %vm130 = vcmp.lt.s32.totalorder %v129, 7
    %131 = vst.msk [vmem:[%s118] sm:$0xff] %vm130, %v127
    %s132 = scalar_lea.vmem [#allocation1], 40
    %s133 = scalar_lea.vmem [#allocation0], 80
    %s134 = scalar_lea.vmem %s133, 7 [#allocation0]
    %v135 = vld [vmem:[%s134] ss:$-1 sm:$0xff]
    %v136 = vrot.slane %v135, 1
    %137 = vst [vmem:[%s132] sm:$0xff] %v136
    %s138 = scalar_lea.vmem %s133, 8 [#allocation0]
    %s139 = scalar_lea.vmem %s138, 7 [#allocation0]
    %v140 = vld [vmem:[%s139] ss:$-1 sm:$0xff]
    %v141 = vrot.slane %v140, 1
    %v142 = vlaneseq
    %v143 = vshrl.u32 %v142, 7
    %vm144 = vcmp.lt.s32.totalorder %v143, 7
    %145 = vst.msk [vmem:[%s132] sm:$0xff] %vm144, %v141
    %s146 = scalar_lea.vmem [#allocation1], 48
    %s147 = scalar_lea.vmem [#allocation0], 96
    %s148 = scalar_lea.vmem %s147, 7 [#allocation0]
    %v149 = vld [vmem:[%s148] ss:$-1 sm:$0xff]
    %v150 = vrot.slane %v149, 1
    %151 = vst [vmem:[%s146] sm:$0xff] %v150
    %s152 = scalar_lea.vmem %s147, 8 [#allocation0]
    %s153 = scalar_lea.vmem %s152, 7 [#allocation0]
    %v154 = vld [vmem:[%s153] ss:$-1 sm:$0xff]
    %v155 = vrot.slane %v154, 1
    %v156 = vlaneseq
    %v157 = vshrl.u32 %v156, 7
    %vm158 = vcmp.lt.s32.totalorder %v157, 7
    %159 = vst.msk [vmem:[%s146] sm:$0xff] %vm158, %v155
    %s160 = scalar_lea.vmem [#allocation1], 56
    %s161 = scalar_lea.vmem [#allocation0], 112
    %s162 = scalar_lea.vmem %s161, 7 [#allocation0]
    %v163 = vld [vmem:[%s162] ss:$-1 sm:$0xff]
    %v164 = vrot.slane %v163, 1
    %165 = vst [vmem:[%s160] sm:$0xff] %v164
    %s166 = scalar_lea.vmem %s161, 8 [#allocation0]
    %s167 = scalar_lea.vmem %s166, 7 [#allocation0]
    %v168 = vld [vmem:[%s167] ss:$-1 sm:$0xff]
    %v169 = vrot.slane %v168, 1
    %v170 = vlaneseq
    %v171 = vshrl.u32 %v170, 7
    %vm172 = vcmp.lt.s32.totalorder %v171, 7
    %173 = vst.msk [vmem:[%s160] sm:$0xff] %vm172, %v169
    // Predicated region
    $region36: #{reverse.0} parent=1 // pred_check
      _
    $region37: #{reverse.0} parent=1 // pred_check_branch
      %175 = sbr.rel (0) target = $region39
    $region38: #{reverse.0} parent=1 // pred_region
      // Predicated region
      $region40: #{reverse.0} parent=38 // pred_check
        _
      $region41: #{reverse.0} parent=38 // pred_check_branch
        %177 = sbr.rel (0) target = $region43
      $region42: #{reverse.0} parent=38 // pred_region
        // Predicated region
        $region55: #{reverse.0} parent=42 // pred_check
          _
        $region56: #{reverse.0} parent=42 // pred_check_branch
          %207 = sbr.rel (0) target = $region58
        $region57: #{reverse.0} parent=42 // pred_region
          loop: start=0, step=1, limit=1
          $region59: #{reverse.0} parent=57 // loop_pre_header
            _
          $region60: #{reverse.0} parent=57 // loop_header
            %s209 = sphi 0, %s213
            %p210 = scmp.ge.s32.totalorder %s209, 1
            %s214 = sphi [#allocation1], [#allocation1]
            %s215 = sphi %s1, %s1
          $region61: #{reverse.0} parent=57 // loop_header_branch
            %212 = sbr.rel (%p210) target = $region65
          $region62: #{reverse.0} parent=57 // loop_body
            %v216 = vld [vmem:[%s214] sm:$0xff]
            %217 = vst [vmem:[%s215] sm:$0xff] %v216
            %v218 = vld [vmem:[%s214 + $0x8] sm:$0xff]
            %219 = vst [vmem:[%s215 + $0x8] sm:$0xff] %v218
            %v220 = vld [vmem:[%s214 + $0x10] sm:$0xff]
            %221 = vst [vmem:[%s215 + $0x10] sm:$0xff] %v220
            %v222 = vld [vmem:[%s214 + $0x18] sm:$0xff]
            %223 = vst [vmem:[%s215 + $0x18] sm:$0xff] %v222
            %v224 = vld [vmem:[%s214 + $0x20] sm:$0xff]
            %225 = vst [vmem:[%s215 + $0x20] sm:$0xff] %v224
            %v226 = vld [vmem:[%s214 + $0x28] sm:$0xff]
            %227 = vst [vmem:[%s215 + $0x28] sm:$0xff] %v226
            %v228 = vld [vmem:[%s214 + $0x30] sm:$0xff]
            %229 = vst [vmem:[%s215 + $0x30] sm:$0xff] %v228
            %v230 = vld [vmem:[%s214 + $0x38] sm:$0xff]
            %231 = vst [vmem:[%s215 + $0x38] sm:$0xff] %v230
          $region63: #{reverse.0} parent=57 // loop_footer
            %s213 = sadd.s32 1, %s209
          $region64: #{reverse.0} parent=57 // loop_footer_branch
            %208 = sbr.rel target = $region60
          $region65: #{reverse.0} parent=57 // loop_exit
            _
        $region58: #{reverse.0} parent=42 // pred_fallthru
          _
        // Predicated region
        $region66: #{reverse.0} parent=42 // pred_check
          _
        $region67: #{reverse.0} parent=42 // pred_check_branch
          %233 = sbr.rel target = $region69
        $region68: #{reverse.0} parent=42 // pred_region
          _
        $region69: #{reverse.0} parent=42 // pred_fallthru
          _
      $region43: #{reverse.0} parent=38 // pred_fallthru
        _
      // Predicated region
      $region44: #{reverse.0} parent=38 // pred_check
        _
      $region45: #{reverse.0} parent=38 // pred_check_branch
        %179 = sbr.rel target = $region47
      $region46: #{reverse.0} parent=38 // pred_region
        %s181 = ssub.s32 256, 1
        loop: start=0, step=1, limit=1
        $region48: #{reverse.0} parent=46 // loop_pre_header
          _
        $region49: #{reverse.0} parent=46 // loop_header
          %s183 = sphi 0, %s187
          %p184 = scmp.ge.s32.totalorder %s183, 1
          %s188 = sphi [#allocation1], [#allocation1]
          %s189 = sphi %s1, %s1
        $region50: #{reverse.0} parent=46 // loop_header_branch
          %186 = sbr.rel (%p184) target = $region54
        $region51: #{reverse.0} parent=46 // loop_body
          %v190 = vld [vmem:[%s188] sm:%s181]
          %191 = vst [vmem:[%s189] sm:%s181] %v190
          %v192 = vld [vmem:[%s188 + $0x8] sm:%s181]
          %193 = vst [vmem:[%s189 + $0x8] sm:%s181] %v192
          %v194 = vld [vmem:[%s188 + $0x10] sm:%s181]
          %195 = vst [vmem:[%s189 + $0x10] sm:%s181] %v194
          %v196 = vld [vmem:[%s188 + $0x18] sm:%s181]
          %197 = vst [vmem:[%s189 + $0x18] sm:%s181] %v196
          %v198 = vld [vmem:[%s188 + $0x20] sm:%s181]
          %199 = vst [vmem:[%s189 + $0x20] sm:%s181] %v198
          %v200 = vld [vmem:[%s188 + $0x28] sm:%s181]
          %201 = vst [vmem:[%s189 + $0x28] sm:%s181] %v200
          %v202 = vld [vmem:[%s188 + $0x30] sm:%s181]
          %203 = vst [vmem:[%s189 + $0x30] sm:%s181] %v202
          %v204 = vld [vmem:[%s188 + $0x38] sm:%s181]
          %205 = vst [vmem:[%s189 + $0x38] sm:%s181] %v204
        $region52: #{reverse.0} parent=46 // loop_footer
          %s187 = sadd.s32 1, %s183
        $region53: #{reverse.0} parent=46 // loop_footer_branch
          %182 = sbr.rel target = $region49
        $region54: #{reverse.0} parent=46 // loop_exit
          _
      $region47: #{reverse.0} parent=38 // pred_fallthru
        _
    $region39: #{reverse.0} parent=1 // pred_fallthru
      _
    %234 = vnop

// kernel: spectral_conv_forward.1
$region0: #{spectral_conv_forward.1}
  #allocation0 [shape = 'u32[]', space=smem, size = 0x4, offset = 0x4, fixed_abs, tag = 'smem constant byte address 0x4 - core index']
  #allocation1 [shape = 'u32[72,128]{1,0:T(1,128)}', space=vmem, size = 0x9000, scoped, tag = 'internal scratch']
  %s0 = inlined_call_operand.vmem [shape: f32[4,4,40], index: 0, kind: input, shape index: {}]
  %s1 = inlined_call_operand.vmem [shape: f32[1,4,40], index: 1, kind: input, shape index: {}]
  %s2 = inlined_call_operand.vmem [shape: f32[4,4,40], index: 2, kind: output, shape index: {}]
  %s3 = sld [smem:[#allocation0]]
  $region41: #{spectral_conv_forward.1} parent=0
    _
  %s5 = ssub.s32 1, %s3
  %s6 = scalar_select 0, %s5, %s3
  loop: start=0, step=1, limit=4
  $region2: #{spectral_conv_forward.1} parent=0 // loop_pre_header
    _
  $region3: #{spectral_conv_forward.1} parent=0 // loop_header
    %s8 = sphi 0, %s12
    %p9 = scmp.ge.s32.totalorder %s8, 4
    %s15 = sphi 0, %s27
    %s16 = sphi 0, %s23
    %s17 = sphi 0, %s15
    %s18 = sphi 0, %s16
    %s19 = sphi 0, %s17
    %s20 = sphi 0, %s18
    %s32 = sphi 0, %s34
    %s35 = sphi 0, %s32
    %s36 = sphi 0, %s35
    %s52 = sphi 0, %s36
    %s58 = sphi 0, %s60
    %s61 = sphi 0, %s58
    %s62 = sphi 0, %s61
    %s78 = sphi 0, %s62
    %s86 = sphi 0, %s88
    %s89 = sphi 0, %s86
    %s90 = sphi 0, %s89
    %s106 = sphi 0, %s90
  $region4: #{spectral_conv_forward.1} parent=0 // loop_header_branch
    %11 = sbr.rel (%p9) target = $region8
  $region5: #{spectral_conv_forward.1} parent=0 // loop_body
    %s13 = ssub.s32 %s8, 1
    %s14 = ssub.s32 %s8, 2
    %s21 = sadd.s32 1, %s16
    %p22 = scmp.ge.s32.totalorder %s21, 1
    %s23 = scalar_select %p22, 0, %s21
    %s24 = sadd.s32 1, %s15
    %s25 = scalar_select %p22, %s24, %s15
    %p26 = scmp.ge.s32.totalorder %s25, 2
    %s27 = scalar_select %p26, 0, %s25
    %s28 = ssub.s32 %s15, %s27
    %s29 = ssub.s32 %s16, %s23
    %s30 = sor.u32 %s28, %s29
    %p31 = scmp.eq.s32.totalorder %s30, 0
    %s33 = sadd.s32 %s32, 1
    %s34 = scalar_select %p31, %s32, %s33
    %p37 = pneg %p31
    %p38 = scmp.eq.s32.totalorder %s8, 1
    %p39 = por %p37, %p38
    %p40 = scmp.ne.s32.totalorder %s32, %s35
    %p41 = scmp.eq.s32.totalorder %s8, 0
    %p42 = por %p40, %p41
    %p43 = scmp.ne.s32.totalorder %s32, %s35
    %p44 = scmp.eq.s32.totalorder %s13, 1
    %p45 = por %p43, %p44
    %p46 = scmp.ne.s32.totalorder %s35, %s36
    %p47 = scmp.eq.s32.totalorder %s13, 0
    %p48 = por %p46, %p47
    %p49 = scmp.ne.s32.totalorder %s35, %s36
    %p50 = scmp.eq.s32.totalorder %s14, 1
    %p51 = por %p49, %p50
    %p53 = scmp.ne.s32.totalorder %s36, %s52
    %p54 = scmp.eq.s32.totalorder %s14, 0
    %p55 = por %p53, %p54
    %s56 = ssub.s32 %s16, %s23
    %p57 = scmp.eq.s32.totalorder %s56, 0
    %s59 = sadd.s32 %s58, 1
    %s60 = scalar_select %p57, %s58, %s59
    %p63 = pneg %p57
    %p64 = scmp.eq.s32.totalorder %s8, 1
    %p65 = por %p63, %p64
    %p66 = scmp.ne.s32.totalorder %s58, %s61
    %p67 = scmp.eq.s32.totalorder %s8, 0
    %p68 = por %p66, %p67
    %p69 = scmp.ne.s32.totalorder %s58, %s61
    %p70 = scmp.eq.s32.totalorder %s13, 1
    %p71 = por %p69, %p70
    %p72 = scmp.ne.s32.totalorder %s61, %s62
    %p73 = scmp.eq.s32.totalorder %s13, 0
    %p74 = por %p72, %p73
    %p75 = scmp.ne.s32.totalorder %s61, %s62
    %p76 = scmp.eq.s32.totalorder %s14, 1
    %p77 = por %p75, %p76
    %p79 = scmp.ne.s32.totalorder %s62, %s78
    %p80 = scmp.eq.s32.totalorder %s14, 0
    %p81 = por %p79, %p80
    %s82 = ssub.s32 %s15, %s27
    %s83 = ssub.s32 %s16, %s23
    %s84 = sor.u32 %s82, %s83
    %p85 = scmp.eq.s32.totalorder %s84, 0
    %s87 = sadd.s32 %s86, 1
    %s88 = scalar_select %p85, %s86, %s87
    %p91 = pneg %p85
    %p92 = scmp.eq.s32.totalorder %s8, 1
    %p93 = por %p91, %p92
    %p94 = scmp.ne.s32.totalorder %s86, %s89
    %p95 = scmp.eq.s32.totalorder %s8, 0
    %p96 = por %p94, %p95
    %p97 = scmp.ne.s32.totalorder %s86, %s89
    %p98 = scmp.eq.s32.totalorder %s13, 1
    %p99 = por %p97, %p98
    %p100 = scmp.ne.s32.totalorder %s89, %s90
    %p101 = scmp.eq.s32.totalorder %s13, 0
    %p102 = por %p100, %p101
    %p103 = scmp.ne.s32.totalorder %s89, %s90
    %p104 = scmp.eq.s32.totalorder %s14, 1
    %p105 = por %p103, %p104
    %p107 = scmp.ne.s32.totalorder %s90, %s106
    %p108 = scmp.eq.s32.totalorder %s14, 0
    %p109 = por %p107, %p108
    %p110 = scmp.le.s32.totalorder 1, %s8
    %p111 = scmp.lt.s32.totalorder %s8, 3
    %p112 = pnand %p110, %p111
    %p113 = pneg %p112
    // Predicated region
    $region9: #{spectral_conv_forward.1} parent=5 // pred_check
      _
    $region10: #{spectral_conv_forward.1} parent=5 // pred_check_branch
      %115 = sbr.rel (%p112) target = $region12
    $region11: #{spectral_conv_forward.1} parent=5 // pred_region
      %s116 = ssub.s32 %s8, 1
      // Predicated region
      $region13: #{spectral_conv_forward.1} parent=11 // pred_check
        %p117 = pneg %p74
      $region14: #{spectral_conv_forward.1} parent=11 // pred_check_branch
        %119 = sbr.rel (%p117) target = $region16
      $region15: #{spectral_conv_forward.1} parent=11 // pred_region
        %p120 = scmp.lt.s32.totalorder %s18, 0
        %s121 = scalar_select %p120, %s18, 0
        %s122 = smul.addr %s121, 4
        %s123 = scalar_lea.vmem %s1, %s122
      $region16: #{spectral_conv_forward.1} parent=11 // pred_fallthru
        _
    $region12: #{spectral_conv_forward.1} parent=5 // pred_fallthru
      _
    %p124 = scmp.lt.s32.totalorder %s8, 2
    // Predicated region
    $region17: #{spectral_conv_forward.1} parent=5 // pred_check
      %p125 = pneg %p124
    $region18: #{spectral_conv_forward.1} parent=5 // pred_check_branch
      %127 = sbr.rel (%p125) target = $region20
    $region19: #{spectral_conv_forward.1} parent=5 // pred_region
      // Predicated region
      $region21: #{spectral_conv_forward.1} parent=19 // pred_check
        %p128 = pneg %p42
      $region22: #{spectral_conv_forward.1} parent=19 // pred_check_branch
        %130 = sbr.rel (%p128) target = $region24
      $region23: #{spectral_conv_forward.1} parent=19 // pred_region
        %s131 = smul.u32 2, %s15
        %p132 = scmp.lt.s32.totalorder %s131, 3
        %s133 = scalar_select %p132, %s131, 3
        %p134 = scmp.lt.s32.totalorder %s16, 0
        %s135 = scalar_select %p134, %s16, 0
        %s136 = sadd.s32 %s135, %s133
        %s137 = smul.addr %s136, 4
        %s138 = scalar_lea.vmem %s0, %s137
        %s139 = smul.u32 2, %s15
      $region24: #{spectral_conv_forward.1} parent=19 // pred_fallthru
        _
    $region20: #{spectral_conv_forward.1} parent=5 // pred_fallthru
      _
    %p140 = scmp.le.s32.totalorder 1, %s8
    %p141 = scmp.lt.s32.totalorder %s8, 3
    %p142 = pnand %p140, %p141
    %p143 = pneg %p142
    // Predicated region
    $region25: #{spectral_conv_forward.1} parent=5 // pred_check
      _
    $region26: #{spectral_conv_forward.1} parent=5 // pred_check_branch
      %145 = sbr.rel (%p142) target = $region28
    $region27: #{spectral_conv_forward.1} parent=5 // pred_region
      %s146 = ssub.s32 %s8, 1
      %s147 = smul.u32 2, %s17
      %p148 = scmp.lt.s32.totalorder %s147, 3
      %s149 = scalar_select %p148, %s147, 3
      %p150 = scmp.lt.s32.totalorder %s18, 0
      %s151 = scalar_select %p150, %s18, 0
      %s152 = sadd.s32 %s151, %s149
      %s153 = smul.addr %s152, 4
      %s154 = scalar_lea.vmem %s0, %s153
      %p155 = pneg %p48
      %p156 = pneg %p45
      %p157 = scmp.lt.s32.totalorder %s18, 0
      %s158 = scalar_select %p157, %s18, 0
      %s159 = smul.addr %s158, 4
      %s160 = scalar_lea.vmem %s1, %s159
      %p161 = pneg %p74
      %p162 = pneg %p71
      %p163 = pneg %p102
      %p164 = pneg %p99
      %s165 = smul.u32 2, %s17
      %p166 = scmp.lt.s32.totalorder %s165, 3
      %s167 = scalar_select %p166, %s165, 3
      %p168 = scmp.lt.s32.totalorder %s18, 0
      %s169 = scalar_select %p168, %s18, 0
      %s170 = sadd.s32 %s169, %s167
      %s171 = smul.addr %s170, 4
      %s172 = scalar_lea.vmem %s2, %s171
      %s173 = smul.u32 2, %s17
      %p174 = scmp.lt.s32.totalorder %s173, 3
      %s175 = scalar_select %p174, %s173, 3
      %p176 = scmp.lt.s32.totalorder %s18, 0
      %s177 = scalar_select %p176, %s18, 0
      %s178 = sadd.s32 %s177, %s175
      %s179 = smul.addr %s178, 4
      %s180 = scalar_lea.vmem %s0, %s179
      %s181 = smul.u32 2, %s17
      %p182 = scmp.lt.s32.totalorder %s18, 0
      %s183 = scalar_select %p182, %s18, 0
      %s184 = smul.addr %s183, 4
      %s185 = scalar_lea.vmem %s1, %s184
      %s186 = smul.u32 2, %s17
      %p187 = scmp.lt.s32.totalorder %s186, 3
      %s188 = scalar_select %p187, %s186, 3
      %p189 = scmp.lt.s32.totalorder %s18, 0
      %s190 = scalar_select %p189, %s18, 0
      %s191 = sadd.s32 %s190, %s188
      %s192 = smul.addr %s191, 4
      %s193 = scalar_lea.vmem %s2, %s192
      %s194 = smul.u32 2, %s17
      %v195 = vld [vmem:[%s180] sm:$0xf]
      %v196 = vld [vmem:[%s180 + $0x4] sm:$0xf]
      %v197 = vld [vmem:[%s185] sm:$0xf]
      %v198 = vmul.f32 %v195, %v197
      %v199 = vmul.f32 %v196, %v197
      %vm200 = vcmask 322560
      %201 = vst.msk [vmem:[%s193] sm:$0xf] %vm200, %v198
      %202 = vst.msk [vmem:[%s193 + $0x4] sm:$0xf] %vm200, %v199
      %s203 = smul.u32 2, %s17
      %p204 = scmp.lt.s32.totalorder %s203, 3
      %s205 = scalar_select %p204, %s203, 3
      %p206 = scmp.lt.s32.totalorder %s18, 0
      %s207 = scalar_select %p206, %s18, 0
      %s208 = sadd.s32 %s207, %s205
      %s209 = smul.addr %s208, 4
      %s210 = scalar_lea.vmem %s2, %s209
      // Predicated region
      $region29: #{spectral_conv_forward.1} parent=27 // pred_check
        %p211 = pneg %p99
      $region30: #{spectral_conv_forward.1} parent=27 // pred_check_branch
        %213 = sbr.rel (%p211) target = $region32
      $region31: #{spectral_conv_forward.1} parent=27 // pred_region
        %s214 = smul.u32 2, %s17
      $region32: #{spectral_conv_forward.1} parent=27 // pred_fallthru
        _
    $region28: #{spectral_conv_forward.1} parent=5 // pred_fallthru
      _
    %p215 = scmp.le.s32.totalorder 2, %s8
    // Predicated region
    $region33: #{spectral_conv_forward.1} parent=5 // pred_check
      %p216 = pneg %p215
    $region34: #{spectral_conv_forward.1} parent=5 // pred_check_branch
      %218 = sbr.rel (%p216) target = $region36
    $region35: #{spectral_conv_forward.1} parent=5 // pred_region
      %s219 = ssub.s32 %s8, 2
      // Predicated region
      $region37: #{spectral_conv_forward.1} parent=35 // pred_check
        %p220 = pneg %p105
      $region38: #{spectral_conv_forward.1} parent=35 // pred_check_branch
        %222 = sbr.rel (%p220) target = $region40
      $region39: #{spectral_conv_forward.1} parent=35 // pred_region
        %s223 = smul.u32 2, %s19
        %p224 = scmp.lt.s32.totalorder %s223, 3
        %s225 = scalar_select %p224, %s223, 3
        %p226 = scmp.lt.s32.totalorder %s20, 0
        %s227 = scalar_select %p226, %s20, 0
        %s228 = sadd.s32 %s227, %s225
        %s229 = smul.addr %s228, 4
        %s230 = scalar_lea.vmem %s2, %s229
      $region40: #{spectral_conv_forward.1} parent=35 // pred_fallthru
        _
    $region36: #{spectral_conv_forward.1} parent=5 // pred_fallthru
      _
  $region6: #{spectral_conv_forward.1} parent=0 // loop_footer
    %s12 = sadd.s32 1, %s8
  $region7: #{spectral_conv_forward.1} parent=0 // loop_footer_branch
    %7 = sbr.rel target = $region3
  $region8: #{spectral_conv_forward.1} parent=0 // loop_exit
    _

</llo_original>
